<compile_context>
chip_gen: v7x
topology: tpu7x:2x2x1
jax: 0.10.0
libtpu: 0.0.40
codegen_flags: <defaults>
</compile_context>

<pallas_src>
import jax
import jax.numpy as jnp
from jax.experimental import pallas as pl
from jax.experimental.pallas import tpu as pltpu


def _round_up(n, m):
    return ((n + m - 1) // m) * m


def mlp_kernel(x_ref, w1_ref, b1_ref, w2_ref, b2_ref, w3_ref, b3_ref, o_ref):
    # Linear(input_dim, 128) + ReLU: bf16 MXU matmul, f32 accumulation.
    h1 = jnp.dot(x_ref[...], w1_ref[...], preferred_element_type=jnp.float32)
    h1 = jnp.maximum(h1 + b1_ref[...], 0.0)                    # f32 VPU
    # Linear(128, 64) + ReLU: cast activations to bf16 for the MXU, accumulate f32.
    h2 = jnp.dot(h1.astype(w2_ref.dtype), w2_ref[...],
                 preferred_element_type=jnp.float32)
    h2 = jnp.maximum(h2 + b2_ref[...], 0.0)                    # f32 VPU
    # Linear(64, 1): VPU elementwise multiply + lane reduce (keeps the MXU free).
    # w3_ref is (1, 64) broadcast over TILE_B rows; b3_ref is a (1,) SMEM scalar.
    out = jnp.sum(h2 * w3_ref[...], axis=-1) + b3_ref[0]       # (TILE_B,) f32
    # Lane-dense store: one unmasked (1, TILE_B) row per tile (TILE_B % 128 == 0).
    o_ref[...] = out[None, :].astype(o_ref.dtype)


def house_price_predictor(x, w1, b1, w2, b2, w3, b3, *, tile_b=4096,
                          force_pallas=False):
    B, D = x.shape

    # Small-batch fallback: below ~2K rows the pallas_call launch + per-step
    # overhead dominates; fused XLA matches or beats the kernel there.
    if B < 2048 and not force_pallas:
        h1 = jnp.maximum(x @ w1 + b1, 0.0)
        h2 = jnp.maximum(h1 @ w2 + b2, 0.0)
        return h2 @ w3 + b3

    # 128-aligned batch tile.  Prefer >=2 grid steps so the "parallel" batch
    # axis can shard across both v7x TensorCores; on v5e/v6e more-than-one tile
    # just means normal double-buffered streaming.
    if B >= 256:
        TILE_B = max(128, min(tile_b, _round_up(pl.cdiv(B, 2), 128)))
    else:
        TILE_B = _round_up(max(B, 1), 128)
    num_tiles = pl.cdiv(B, TILE_B)

    # bf16 MXU inputs (halves x DMA bytes, 1-pass bf16 matmuls); f32 elsewhere.
    x_bf = x.astype(jnp.bfloat16)
    w1_bf = w1.astype(jnp.bfloat16)
    w2_bf = w2.astype(jnp.bfloat16)
    w3_row = w3.reshape(1, -1).astype(jnp.float32)   # (64, 1) -> (1, 64)
    b3_s = b3.reshape(-1).astype(jnp.float32)        # (1,) scalar bias -> SMEM

    out = pl.pallas_call(
        mlp_kernel,
        out_shape=jax.ShapeDtypeStruct((num_tiles, TILE_B), jnp.float32),
        grid=(num_tiles,),
        in_specs=[
            # x: streamed / double-buffered along the batch axis (partial last
            # tile reads are bounded by the DMA; padded rows are sliced off).
            pl.BlockSpec((TILE_B, D), lambda i: (i, 0)),
            # weights & biases: constant index maps -> VMEM-resident across grid
            pl.BlockSpec(w1_bf.shape, lambda i: (0, 0)),
            pl.BlockSpec(b1.shape, lambda i: (0, 0)),
            pl.BlockSpec(w2_bf.shape, lambda i: (0, 0)),
            pl.BlockSpec(b2.shape, lambda i: (0, 0)),
            pl.BlockSpec(w3_row.shape, lambda i: (0, 0)),
            # scalar final bias lives in SMEM
            pl.BlockSpec(memory_space=pltpu.MemorySpace.SMEM),
        ],
        out_specs=pl.BlockSpec((1, TILE_B), lambda i: (i, 0)),
        compiler_params=pltpu.CompilerParams(
            dimension_semantics=("parallel",),   # batch tiles shard across TCs
        ),
    )(x_bf, w1_bf, b1, w2_bf, b2, w3_row, b3_s)

    # Drop padded rows of the last (partial) tile and restore (B, 1).
    return out.reshape(-1)[:B].reshape(B, 1)


def init_params(key, input_dim):
    # Deterministic init (uniform, roughly like PyTorch's default Linear init).
    def linear(key, fan_in, fan_out):
        kw, kb = jax.random.split(key)
        bound = 1.0 / jnp.sqrt(fan_in)
        # stored as (in, out) == W^T relative to PyTorch's (out, in)
        w = jax.random.uniform(kw, (fan_in, fan_out), jnp.float32, -bound, bound)
        b = jax.random.uniform(kb, (1, fan_out), jnp.float32, -bound, bound)
        return w, b

    k1, k2, k3 = jax.random.split(key, 3)
    w1, b1 = linear(k1, input_dim, 128)
    w2, b2 = linear(k2, 128, 64)
    w3, b3 = linear(k3, 64, 1)
    return w1, b1, w2, b2, w3, b3


def _ref_forward_bf16(x, w1, b1, w2, b2, w3, b3):
    # Mirrors the kernel's bf16-input / f32-accumulate math.
    bf, f32 = jnp.bfloat16, jnp.float32
    h1 = jnp.dot(x.astype(bf), w1.astype(bf), preferred_element_type=f32)
    h1 = jnp.maximum(h1 + b1, 0.0)
    h2 = jnp.dot(h1.astype(bf), w2.astype(bf), preferred_element_type=f32)
    h2 = jnp.maximum(h2 + b2, 0.0)
    return h2 @ w3 + b3


if __name__ == "__main__":
    key = jax.random.PRNGKey(0)
    kx, kp = jax.random.split(key)

    batch, input_dim = 8, 16
    x = jax.random.normal(kx, (batch, input_dim), jnp.float32)
    w1, b1, w2, b2, w3, b3 = init_params(kp, input_dim)

    # 1) Pallas path (forced, since the small batch would otherwise use the
    #    XLA fallback) — single 128-wide tile.
    out = house_price_predictor(x, w1, b1, w2, b2, w3, b3, force_pallas=True)
    out = jax.block_until_ready(out)
    ref = _ref_forward_bf16(x, w1, b1, w2, b2, w3, b3)
    assert out.shape == (batch, 1)
    assert jnp.allclose(out, ref, atol=1e-3, rtol=1e-3)

    # 2) Multi-tile Pallas path with a partial last tile (2 tiles of 256 rows).
    batch2 = 300
    x2 = jax.random.normal(jax.random.PRNGKey(1), (batch2, input_dim), jnp.float32)
    out2 = house_price_predictor(x2, w1, b1, w2, b2, w3, b3, force_pallas=True)
    out2 = jax.block_until_ready(out2)
    ref2 = _ref_forward_bf16(x2, w1, b1, w2, b2, w3, b3)
    assert out2.shape == (batch2, 1)
    assert jnp.allclose(out2, ref2, atol=1e-3, rtol=1e-3)

    # 3) Small-batch XLA fallback path (exact f32 math).
    out3 = house_price_predictor(x, w1, b1, w2, b2, w3, b3)
    out3 = jax.block_until_ready(out3)
    ref3 = jnp.maximum(jnp.maximum(x @ w1 + b1, 0.0) @ w2 + b2, 0.0) @ w3 + b3
    assert jnp.allclose(out3, ref3, atol=1e-5, rtol=1e-5)

    print("KERNEL_OK")
</pallas_src>

<mosaic_0001>
module attributes {stable_mosaic.version = 11 : i64} {
  func.func @mlp_kernel(%arg0: i32, %arg1: memref<128x16xbf16, #tpu.memory_space<vmem>>, %arg2: memref<16x128xbf16, #tpu.memory_space<vmem>>, %arg3: memref<1x128xf32, #tpu.memory_space<vmem>>, %arg4: memref<128x64xbf16, #tpu.memory_space<vmem>>, %arg5: memref<1x64xf32, #tpu.memory_space<vmem>>, %arg6: memref<1x64xf32, #tpu.memory_space<vmem>>, %arg7: memref<1xf32, #tpu.memory_space<smem>>, %arg8: memref<1x128xf32, #tpu.memory_space<vmem>>) attributes {dimension_semantics = [#tpu.dimension_semantics<parallel>], iteration_bounds = array<i64: 1>, scalar_prefetch = 0 : i64, scratch_operands = 0 : i64, tpu.core_type = #tpu.core_type<tc>, window_params = [{transform_indices = @transform_0, window_bounds = array<i64: 128, 16>}, {pipeline_mode = #tpu.pipeline_mode<synchronous>, transform_indices = @transform_1, window_bounds = array<i64: 16, 128>}, {pipeline_mode = #tpu.pipeline_mode<synchronous>, transform_indices = @transform_2, window_bounds = array<i64: 1, 128>}, {pipeline_mode = #tpu.pipeline_mode<synchronous>, transform_indices = @transform_3, window_bounds = array<i64: 128, 64>}, {pipeline_mode = #tpu.pipeline_mode<synchronous>, transform_indices = @transform_4, window_bounds = array<i64: 1, 64>}, {pipeline_mode = #tpu.pipeline_mode<synchronous>, transform_indices = @transform_5, window_bounds = array<i64: 1, 64>}, {transform_indices = @transform_6, window_bounds = array<i64: 1>}, {transform_indices = @transform_7, window_bounds = array<i64: 1, 128>}]} {
    %c0 = arith.constant 0 : index
    %c0_0 = arith.constant 0 : index
    %0 = vector.load %arg1[%c0, %c0_0] : memref<128x16xbf16, #tpu.memory_space<vmem>>, vector<128x16xbf16>
    %c0_1 = arith.constant 0 : index
    %c0_2 = arith.constant 0 : index
    %1 = vector.load %arg2[%c0_1, %c0_2] : memref<16x128xbf16, #tpu.memory_space<vmem>>, vector<16x128xbf16>
    %cst = arith.constant dense<0.000000e+00> : vector<128x128xf32>
    %2 = tpu.matmul %0, %1, %cst {dimension_numbers = #tpu.dot_dimension_numbers<[1], [0], [0], [1], [0, 0, 1, 1], [], []>} : vector<128x16xbf16>, vector<16x128xbf16>, vector<128x128xf32> -> vector<128x128xf32>
    %c0_3 = arith.constant 0 : index
    %c0_4 = arith.constant 0 : index
    %3 = vector.load %arg3[%c0_3, %c0_4] : memref<1x128xf32, #tpu.memory_space<vmem>>, vector<1x128xf32>
    %4 = vector.broadcast %3 : vector<1x128xf32> to vector<128x128xf32>
    %5 = arith.addf %2, %4 : vector<128x128xf32>
    %cst_5 = arith.constant 0.000000e+00 : f32
    %6 = vector.broadcast %cst_5 : f32 to vector<128x128xf32>
    %7 = arith.maximumf %5, %6 : vector<128x128xf32>
    %8 = arith.truncf %7 : vector<128x128xf32> to vector<128x128xbf16>
    %c0_6 = arith.constant 0 : index
    %c0_7 = arith.constant 0 : index
    %9 = vector.load %arg4[%c0_6, %c0_7] : memref<128x64xbf16, #tpu.memory_space<vmem>>, vector<128x64xbf16>
    %cst_8 = arith.constant dense<0.000000e+00> : vector<128x64xf32>
    %10 = tpu.matmul %8, %9, %cst_8 {dimension_numbers = #tpu.dot_dimension_numbers<[1], [0], [0], [1], [0, 0, 1, 1], [], []>} : vector<128x128xbf16>, vector<128x64xbf16>, vector<128x64xf32> -> vector<128x64xf32>
    %c0_9 = arith.constant 0 : index
    %c0_10 = arith.constant 0 : index
    %11 = vector.load %arg5[%c0_9, %c0_10] : memref<1x64xf32, #tpu.memory_space<vmem>>, vector<1x64xf32>
    %12 = vector.broadcast %11 : vector<1x64xf32> to vector<128x64xf32>
    %13 = arith.addf %10, %12 : vector<128x64xf32>
    %cst_11 = arith.constant 0.000000e+00 : f32
    %14 = vector.broadcast %cst_11 : f32 to vector<128x64xf32>
    %15 = arith.maximumf %13, %14 : vector<128x64xf32>
    %c0_12 = arith.constant 0 : index
    %c0_13 = arith.constant 0 : index
    %16 = vector.load %arg6[%c0_12, %c0_13] : memref<1x64xf32, #tpu.memory_space<vmem>>, vector<1x64xf32>
    %17 = vector.broadcast %16 : vector<1x64xf32> to vector<128x64xf32>
    %18 = arith.mulf %15, %17 : vector<128x64xf32>
    %cst_14 = arith.constant dense<0.000000e+00> : vector<128xf32>
    %19 = vector.multi_reduction <add>, %18, %cst_14 [1] : vector<128x64xf32> to vector<128xf32>
    %c0_15 = arith.constant 0 : index
    %20 = memref.load %arg7[%c0_15] : memref<1xf32, #tpu.memory_space<smem>>
    %21 = vector.broadcast %20 : f32 to vector<128xf32>
    %22 = arith.addf %19, %21 : vector<128xf32>
    %23 = vector.shape_cast %22 : vector<128xf32> to vector<1x128xf32>
    %c0_16 = arith.constant 0 : index
    %c0_17 = arith.constant 0 : index
    %24 = vector.load %arg8[%c0_16, %c0_17] : memref<1x128xf32, #tpu.memory_space<vmem>>, vector<1x128xf32>
    tpu.vector_store %arg8[%c0_16, %c0_17], %23 {strides = array<i32>} : memref<1x128xf32, #tpu.memory_space<vmem>>, vector<1x128xf32>,
    return
  }
  func.func @transform_0(%arg0: i32) -> (i32, i32) {
    %c0_i32 = arith.constant 0 : i32
    %c0_i32_0 = arith.constant 0 : i32
    return %arg0, %c0_i32 : i32, i32
  }
  func.func @transform_1(%arg0: i32) -> (i32, i32) {
    %c0_i32 = arith.constant 0 : i32
    %c0_i32_0 = arith.constant 0 : i32
    %c0_i32_1 = arith.constant 0 : i32
    return %c0_i32, %c0_i32_0 : i32, i32
  }
  func.func @transform_2(%arg0: i32) -> (i32, i32) {
    %c0_i32 = arith.constant 0 : i32
    %c0_i32_0 = arith.constant 0 : i32
    %c0_i32_1 = arith.constant 0 : i32
    return %c0_i32, %c0_i32_0 : i32, i32
  }
  func.func @transform_3(%arg0: i32) -> (i32, i32) {
    %c0_i32 = arith.constant 0 : i32
    %c0_i32_0 = arith.constant 0 : i32
    %c0_i32_1 = arith.constant 0 : i32
    return %c0_i32, %c0_i32_0 : i32, i32
  }
  func.func @transform_4(%arg0: i32) -> (i32, i32) {
    %c0_i32 = arith.constant 0 : i32
    %c0_i32_0 = arith.constant 0 : i32
    %c0_i32_1 = arith.constant 0 : i32
    return %c0_i32, %c0_i32_0 : i32, i32
  }
  func.func @transform_5(%arg0: i32) -> (i32, i32) {
    %c0_i32 = arith.constant 0 : i32
    %c0_i32_0 = arith.constant 0 : i32
    %c0_i32_1 = arith.constant 0 : i32
    return %c0_i32, %c0_i32_0 : i32, i32
  }
  func.func @transform_6(%arg0: i32) -> i32 {
    %c0_i32 = arith.constant 0 : i32
    %c0_i32_0 = arith.constant 0 : i32
    return %c0_i32 : i32
  }
  func.func @transform_7(%arg0: i32) -> (i32, i32) {
    %c0_i32 = arith.constant 0 : i32
    %c0_i32_0 = arith.constant 0 : i32
    return %arg0, %c0_i32 : i32, i32
  }
}

</mosaic_0001>

<llo_original>
// kernel: tpu_custom_call.1
$region0: #{tpu_custom_call.1}
  #allocation0 [shape = 'u32[]', space=smem, size = 0x4, offset = 0x4, fixed_abs, tag = 'smem constant byte address 0x4 - core index']
  #allocation1 [shape = 'u32[144,128]{1,0:T(1,128)}', space=vmem, size = 0x12000, scoped, tag = 'internal scratch']
  #allocation2 [shape = 'f32[1]{0:T(128)S(6)}', space=smem, size = 0x200, scoped, tag = 'scoped memory for tpu_custom_call.1']
  %s0 = inlined_call_operand.vmem [shape: bf16[8,16], index: 0, kind: input, shape index: {}]
  %s1 = inlined_call_operand.vmem [shape: bf16[16,128], index: 1, kind: input, shape index: {}]
  %s2 = inlined_call_operand.vmem [shape: f32[1,128], index: 2, kind: input, shape index: {}]
  %s3 = inlined_call_operand.vmem [shape: bf16[128,64], index: 3, kind: input, shape index: {}]
  %s4 = inlined_call_operand.vmem [shape: f32[1,64], index: 4, kind: input, shape index: {}]
  %s5 = inlined_call_operand.vmem [shape: f32[1,64], index: 5, kind: input, shape index: {}]
  %s6 = inlined_call_operand.<no memory space> [shape: f32[1], index: 6, kind: input, shape index: {}]
  %s7 = inlined_call_operand.hbm [shape: f32[1,128], index: 7, kind: output, shape index: {}]
  %s8 = sld [smem:[#allocation0]]
  $region38: #{tpu_custom_call.1} parent=0
    _
  %s10 = ssub.s32 1, %s8
  %s11 = scalar_select 0, %s10, %s8
  %12 = sst [smem:[#allocation2]] %s6
  $region1: #{tpu_custom_call.1} parent=0
    #allocation3 [shape = 'u8[512]{0}', space=vmem, size = 0x400, scoped, tag = 'output window, operand 0, single buffered']
    #allocation4 [shape = 's32[1]{0}', space=sflag, size = 0x4, scoped, tag = 'scoped memory for tpu_custom_call.1']
    %13 = vsyncpa [#allocation4], 0
    // Predicated region
    $region2: #{tpu_custom_call.1} parent=1 // pred_check
      _
    $region3: #{tpu_custom_call.1} parent=1 // pred_check_branch
      %15 = sbr.rel (0) target = $region5
    $region4: #{tpu_custom_call.1} parent=1 // pred_region
      _
    $region5: #{tpu_custom_call.1} parent=1 // pred_fallthru
      _
    // Predicated region
    $region6: #{tpu_custom_call.1} parent=1 // pred_check
      _
    $region7: #{tpu_custom_call.1} parent=1 // pred_check_branch
      %17 = sbr.rel (0) target = $region9
    $region8: #{tpu_custom_call.1} parent=1 // pred_region
      _
    $region9: #{tpu_custom_call.1} parent=1 // pred_fallthru
      _
    // Predicated region
    $region10: #{tpu_custom_call.1} parent=1 // pred_check
      _
    $region11: #{tpu_custom_call.1} parent=1 // pred_check_branch
      %19 = sbr.rel (0) target = $region13
    $region12: #{tpu_custom_call.1} parent=1 // pred_region
      _
    $region13: #{tpu_custom_call.1} parent=1 // pred_fallthru
      _
    // Predicated region
    $region14: #{tpu_custom_call.1} parent=1 // pred_check
      _
    $region15: #{tpu_custom_call.1} parent=1 // pred_check_branch
      %21 = sbr.rel (0) target = $region17
    $region16: #{tpu_custom_call.1} parent=1 // pred_region
      _
    $region17: #{tpu_custom_call.1} parent=1 // pred_fallthru
      _
    // Predicated region
    $region18: #{tpu_custom_call.1} parent=1 // pred_check
      _
    $region19: #{tpu_custom_call.1} parent=1 // pred_check_branch
      %23 = sbr.rel (0) target = $region21
    $region20: #{tpu_custom_call.1} parent=1 // pred_region
      _
    $region21: #{tpu_custom_call.1} parent=1 // pred_fallthru
      _
    // Predicated region
    $region22: #{tpu_custom_call.1} parent=1 // pred_check
      _
    $region23: #{tpu_custom_call.1} parent=1 // pred_check_branch
      %25 = sbr.rel (0) target = $region25
    $region24: #{tpu_custom_call.1} parent=1 // pred_region
      _
    $region25: #{tpu_custom_call.1} parent=1 // pred_fallthru
      _
    // Predicated region
    $region26: #{tpu_custom_call.1} parent=1 // pred_check
      _
    $region27: #{tpu_custom_call.1} parent=1 // pred_check_branch
      %27 = sbr.rel (0) target = $region29
    $region28: #{tpu_custom_call.1} parent=1 // pred_region
      _
    $region29: #{tpu_custom_call.1} parent=1 // pred_fallthru
      _
    %v29 = vld [vmem:[%s0] sm:$0xf]
    %v30 = vld [vmem:[%s0 + $0x4] sm:$0xf]
    %v31 = vld [vmem:[%s0 + $0x8] sm:$0xf]
    %v32 = vld [vmem:[%s0 + $0xc] sm:$0xf]
    %v33 = vld [vmem:[%s0 + $0x10] sm:$0xf]
    %v34 = vld [vmem:[%s0 + $0x14] sm:$0xf]
    %v35 = vld [vmem:[%s0 + $0x18] sm:$0xf]
    %v36 = vld [vmem:[%s0 + $0x1c] sm:$0xf]
    %v37 = vld [vmem:[%s0 + $0x20] sm:$0xf]
    %v38 = vld [vmem:[%s0 + $0x24] sm:$0xf]
    %v39 = vld [vmem:[%s0 + $0x28] sm:$0xf]
    %v40 = vld [vmem:[%s0 + $0x2c] sm:$0xf]
    %v41 = vld [vmem:[%s0 + $0x30] sm:$0xf]
    %v42 = vld [vmem:[%s0 + $0x34] sm:$0xf]
    %v43 = vld [vmem:[%s0 + $0x38] sm:$0xf]
    %v44 = vld [vmem:[%s0 + $0x3c] sm:$0xf]
    %v45 = vld [vmem:[%s1] sm:$0xf]
    %v46 = vld [vmem:[%s1 + $0x4] sm:$0xf]
    %v47 = vld [vmem:[%s2] sm:$0x1]
    %v49 = vlaneseq
    %v50 = vshrl.u32 %v49, 7
    %v51 = vsub.s32 0, %v50
    %v52 = vrot.slane %v47, %v51
    %v70 = vunpack.c.l.b16 %v29
    %v71 = vunpack.c.l.b16 %v30
    %v72 = vunpack.c.l.b16 %v31
    %v73 = vunpack.c.l.b16 %v32
    %v74 = vunpack.c.l.b16 %v33
    %v75 = vunpack.c.l.b16 %v34
    %v76 = vunpack.c.l.b16 %v35
    %v77 = vunpack.c.l.b16 %v36
    %v78 = vunpack.c.l.b16 %v37
    %v79 = vunpack.c.l.b16 %v38
    %v80 = vunpack.c.l.b16 %v39
    %v81 = vunpack.c.l.b16 %v40
    %v82 = vunpack.c.l.b16 %v41
    %v83 = vunpack.c.l.b16 %v42
    %v84 = vunpack.c.l.b16 %v43
    %v85 = vunpack.c.l.b16 %v44
    %v86 = vpack.c.b16 %v71, %v70
    %v87 = vpack.c.b16 %v73, %v72
    %v88 = vpack.c.b16 %v75, %v74
    %v89 = vpack.c.b16 %v77, %v76
    %v90 = vpack.c.b16 %v79, %v78
    %v91 = vpack.c.b16 %v81, %v80
    %v92 = vpack.c.b16 %v83, %v82
    %v93 = vpack.c.b16 %v85, %v84
    %v96 = vunpack.c.l.b16 %v45
    %v97 = vunpack.c.l.b16 %v46
    %v98 = vpack.c.b16 %v97, %v96
    %vm100 = vcmask 130048
    %v102 = vsel %vm100, %v86, 0
    %v105 = vsel %vm100, %v87, 0
    %v108 = vsel %vm100, %v88, 0
    %v111 = vsel %vm100, %v89, 0
    %v114 = vsel %vm100, %v90, 0
    %v117 = vsel %vm100, %v91, 0
    %v120 = vsel %vm100, %v92, 0
    %v123 = vsel %vm100, %v93, 0
    %125 = vmatprep.subr.bf16.mxu0 0
    %126 = vmatpush1.bf16.msra.mxu0 %v98
    %127 = vmatprep.subr.bf16.mxu0 0
    %128 = vmatpush1.bf16.msra.mxu0 0
    %129 = vmatprep.subr.bf16.mxu0 0
    %130 = vmatpush1.bf16.msra.mxu0 0
    %131 = vmatprep.subr.bf16.mxu0 0
    %132 = vmatpush1.bf16.msra.mxu0 0
    %133 = vmatprep.subr.bf16.mxu0 0
    %134 = vmatpush1.bf16.msra.mxu0 0
    %135 = vmatprep.subr.bf16.mxu0 0
    %136 = vmatpush1.bf16.msra.mxu0 0
    %137 = vmatprep.subr.bf16.mxu0 0
    %138 = vmatpush1.bf16.msra.mxu0 0
    %139 = vmatprep.subr.bf16.mxu0 0
    %140 = vmatpush1.bf16.msra.mxu0 0
    %141 = vmatprep.subr.bf16.mxu0 0
    %142 = vmatpush1.bf16.msra.mxu0 0
    %143 = vmatprep.subr.bf16.mxu0 0
    %144 = vmatpush1.bf16.msra.mxu0 0
    %145 = vmatprep.subr.bf16.mxu0 0
    %146 = vmatpush1.bf16.msra.mxu0 0
    %147 = vmatprep.subr.bf16.mxu0 0
    %148 = vmatpush1.bf16.msra.mxu0 0
    %149 = vmatprep.subr.bf16.mxu0 0
    %150 = vmatpush1.bf16.msra.mxu0 0
    %151 = vmatprep.subr.bf16.mxu0 0
    %152 = vmatpush1.bf16.msra.mxu0 0
    %153 = vmatprep.subr.bf16.mxu0 0
    %154 = vmatpush1.bf16.msra.mxu0 0
    %155 = vmatprep.subr.bf16.mxu0 0
    %156 = vmatpush1.bf16.msra.mxu0 0
    %157 = vmatprep.mubr.bf16.mxu0 0
    %158 = vmatmul.mubr.bf16.gmra.mrb[0].mxu0 %v102
    %v159 = vpop.f32.mrb[0].mxu0
    %v160 = vadd.f32 %v52, %v159
    %v161 = vpop.f32.mrb[0].mxu0
    %v162 = vpop.f32.mrb[0].mxu0
    %v163 = vadd.f32 %v52, %v162
    %v164 = vpop.f32.mrb[0].mxu0
    %165 = vmatprep.mubr.bf16.mxu0 0
    %166 = vmatmul.mubr.bf16.gmra.mrb[0].mxu0 %v105
    %v167 = vpop.f32.mrb[0].mxu0
    %v168 = vadd.f32 %v52, %v167
    %v169 = vpop.f32.mrb[0].mxu0
    %v170 = vpop.f32.mrb[0].mxu0
    %v171 = vadd.f32 %v52, %v170
    %v172 = vpop.f32.mrb[0].mxu0
    %173 = vmatprep.mubr.bf16.mxu0 0
    %174 = vmatmul.mubr.bf16.gmra.mrb[0].mxu0 %v108
    %v175 = vpop.f32.mrb[0].mxu0
    %v176 = vadd.f32 %v52, %v175
    %v177 = vpop.f32.mrb[0].mxu0
    %v178 = vpop.f32.mrb[0].mxu0
    %v179 = vadd.f32 %v52, %v178
    %v180 = vpop.f32.mrb[0].mxu0
    %181 = vmatprep.mubr.bf16.mxu0 0
    %182 = vmatmul.mubr.bf16.gmra.mrb[0].mxu0 %v111
    %v183 = vpop.f32.mrb[0].mxu0
    %v184 = vadd.f32 %v52, %v183
    %v185 = vpop.f32.mrb[0].mxu0
    %v186 = vpop.f32.mrb[0].mxu0
    %v187 = vadd.f32 %v52, %v186
    %v188 = vpop.f32.mrb[0].mxu0
    %189 = vmatprep.mubr.bf16.mxu0 0
    %190 = vmatmul.mubr.bf16.gmra.mrb[0].mxu0 %v114
    %v191 = vpop.f32.mrb[0].mxu0
    %v192 = vadd.f32 %v52, %v191
    %v193 = vpop.f32.mrb[0].mxu0
    %v194 = vpop.f32.mrb[0].mxu0
    %v195 = vadd.f32 %v52, %v194
    %v196 = vpop.f32.mrb[0].mxu0
    %197 = vmatprep.mubr.bf16.mxu0 0
    %198 = vmatmul.mubr.bf16.gmra.mrb[0].mxu0 %v117
    %v199 = vpop.f32.mrb[0].mxu0
    %v200 = vadd.f32 %v52, %v199
    %v201 = vpop.f32.mrb[0].mxu0
    %v202 = vpop.f32.mrb[0].mxu0
    %v203 = vadd.f32 %v52, %v202
    %v204 = vpop.f32.mrb[0].mxu0
    %205 = vmatprep.mubr.bf16.mxu0 0
    %206 = vmatmul.mubr.bf16.gmra.mrb[0].mxu0 %v120
    %v207 = vpop.f32.mrb[0].mxu0
    %v208 = vadd.f32 %v52, %v207
    %v209 = vpop.f32.mrb[0].mxu0
    %v210 = vpop.f32.mrb[0].mxu0
    %v211 = vadd.f32 %v52, %v210
    %v212 = vpop.f32.mrb[0].mxu0
    %213 = vmatprep.mubr.bf16.mxu0 0
    %214 = vmatmul.mubr.bf16.gmra.mrb[0].mxu0 %v123
    %v215 = vpop.f32.mrb[0].mxu0
    %v216 = vadd.f32 %v52, %v215
    %v217 = vpop.f32.mrb[0].mxu0
    %v218 = vpop.f32.mrb[0].mxu0
    %v219 = vadd.f32 %v52, %v218
    %v220 = vpop.f32.mrb[0].mxu0
    %221 = vdwg.mxu0
    %v222 = vmax.f32 %v160, 0.0
    %v223 = vmax.f32 %v163, 0.0
    %v224 = vmax.f32 %v168, 0.0
    %v225 = vmax.f32 %v171, 0.0
    %v226 = vmax.f32 %v176, 0.0
    %v227 = vmax.f32 %v179, 0.0
    %v228 = vmax.f32 %v184, 0.0
    %v229 = vmax.f32 %v187, 0.0
    %v230 = vmax.f32 %v192, 0.0
    %v231 = vmax.f32 %v195, 0.0
    %v232 = vmax.f32 %v200, 0.0
    %v233 = vmax.f32 %v203, 0.0
    %v234 = vmax.f32 %v208, 0.0
    %v235 = vmax.f32 %v211, 0.0
    %v236 = vmax.f32 %v216, 0.0
    %v237 = vmax.f32 %v219, 0.0
    %v238 = vpack.c.bf16 %v223, %v222
    %v239 = vpack.c.bf16 %v225, %v224
    %v240 = vpack.c.bf16 %v227, %v226
    %v241 = vpack.c.bf16 %v229, %v228
    %v242 = vpack.c.bf16 %v231, %v230
    %v243 = vpack.c.bf16 %v233, %v232
    %v244 = vpack.c.bf16 %v235, %v234
    %v245 = vpack.c.bf16 %v237, %v236
    %v246 = vld [vmem:[%s3] sm:$0xf]
    %v247 = vld [vmem:[%s3 + $0x4] sm:$0xf]
    %v248 = vld [vmem:[%s3 + $0x8] sm:$0xf]
    %v249 = vld [vmem:[%s3 + $0xc] sm:$0xf]
    %v250 = vld [vmem:[%s3 + $0x10] sm:$0xf]
    %v251 = vld [vmem:[%s3 + $0x14] sm:$0xf]
    %v252 = vld [vmem:[%s3 + $0x18] sm:$0xf]
    %v253 = vld [vmem:[%s3 + $0x1c] sm:$0xf]
    %v254 = vld [vmem:[%s3 + $0x20] sm:$0xf]
    %v255 = vld [vmem:[%s3 + $0x24] sm:$0xf]
    %v256 = vld [vmem:[%s3 + $0x28] sm:$0xf]
    %v257 = vld [vmem:[%s3 + $0x2c] sm:$0xf]
    %v258 = vld [vmem:[%s3 + $0x30] sm:$0xf]
    %v259 = vld [vmem:[%s3 + $0x34] sm:$0xf]
    %v260 = vld [vmem:[%s3 + $0x38] sm:$0xf]
    %v261 = vld [vmem:[%s3 + $0x3c] sm:$0xf]
    %v262 = vld [vmem:[%s4] sm:$0x1]
    %v264 = vlaneseq
    %v265 = vshrl.u32 %v264, 7
    %v266 = vsub.s32 0, %v265
    %v267 = vrot.slane %v262, %v266
    %v285 = vunpack.c.l.b16 %v246
    %v286 = vunpack.c.l.b16 %v247
    %v287 = vunpack.c.l.b16 %v248
    %v288 = vunpack.c.l.b16 %v249
    %v289 = vunpack.c.l.b16 %v250
    %v290 = vunpack.c.l.b16 %v251
    %v291 = vunpack.c.l.b16 %v252
    %v292 = vunpack.c.l.b16 %v253
    %v293 = vunpack.c.l.b16 %v254
    %v294 = vunpack.c.l.b16 %v255
    %v295 = vunpack.c.l.b16 %v256
    %v296 = vunpack.c.l.b16 %v257
    %v297 = vunpack.c.l.b16 %v258
    %v298 = vunpack.c.l.b16 %v259
    %v299 = vunpack.c.l.b16 %v260
    %v300 = vunpack.c.l.b16 %v261
    %v301 = vpack.c.b16 %v286, %v285
    %v302 = vpack.c.b16 %v288, %v287
    %v303 = vpack.c.b16 %v290, %v289
    %v304 = vpack.c.b16 %v292, %v291
    %v305 = vpack.c.b16 %v294, %v293
    %v306 = vpack.c.b16 %v296, %v295
    %v307 = vpack.c.b16 %v298, %v297
    %v308 = vpack.c.b16 %v300, %v299
    %317 = vmatprep.subr.bf16.mxu0 0
    %318 = vmatpush1.bf16.msra.mxu0 %v301
    %319 = vmatprep.subr.bf16.mxu0 0
    %320 = vmatpush1.bf16.msra.mxu0 %v302
    %321 = vmatprep.subr.bf16.mxu0 0
    %322 = vmatpush1.bf16.msra.mxu0 %v303
    %323 = vmatprep.subr.bf16.mxu0 0
    %324 = vmatpush1.bf16.msra.mxu0 %v304
    %325 = vmatprep.subr.bf16.mxu0 0
    %326 = vmatpush1.bf16.msra.mxu0 %v305
    %327 = vmatprep.subr.bf16.mxu0 0
    %328 = vmatpush1.bf16.msra.mxu0 %v306
    %329 = vmatprep.subr.bf16.mxu0 0
    %330 = vmatpush1.bf16.msra.mxu0 %v307
    %331 = vmatprep.subr.bf16.mxu0 0
    %332 = vmatpush1.bf16.msra.mxu0 %v308
    %333 = vmatprep.subr.bf16.mxu0 0
    %334 = vmatpush1.bf16.msra.mxu0 0
    %335 = vmatprep.subr.bf16.mxu0 0
    %336 = vmatpush1.bf16.msra.mxu0 0
    %337 = vmatprep.subr.bf16.mxu0 0
    %338 = vmatpush1.bf16.msra.mxu0 0
    %339 = vmatprep.subr.bf16.mxu0 0
    %340 = vmatpush1.bf16.msra.mxu0 0
    %341 = vmatprep.subr.bf16.mxu0 0
    %342 = vmatpush1.bf16.msra.mxu0 0
    %343 = vmatprep.subr.bf16.mxu0 0
    %344 = vmatpush1.bf16.msra.mxu0 0
    %345 = vmatprep.subr.bf16.mxu0 0
    %346 = vmatpush1.bf16.msra.mxu0 0
    %347 = vmatprep.subr.bf16.mxu0 0
    %348 = vmatpush1.bf16.msra.mxu0 0
    %349 = vmatprep.mubr.bf16.mxu0 0
    %350 = vmatmul.mubr.bf16.gmra.mrb[0].mxu0 %v238
    %v351 = vpop.f32.mrb[0].mxu0
    %v352 = vadd.f32 %v267, %v351
    %v353 = vpop.f32.mrb[0].mxu0
    %v354 = vpop.f32.mrb[0].mxu0
    %v355 = vadd.f32 %v267, %v354
    %v356 = vpop.f32.mrb[0].mxu0
    %357 = vmatprep.mubr.bf16.mxu0 0
    %358 = vmatmul.mubr.bf16.gmra.mrb[0].mxu0 %v239
    %v359 = vpop.f32.mrb[0].mxu0
    %v360 = vadd.f32 %v267, %v359
    %v361 = vpop.f32.mrb[0].mxu0
    %v362 = vpop.f32.mrb[0].mxu0
    %v363 = vadd.f32 %v267, %v362
    %v364 = vpop.f32.mrb[0].mxu0
    %365 = vmatprep.mubr.bf16.mxu0 0
    %366 = vmatmul.mubr.bf16.gmra.mrb[0].mxu0 %v240
    %v367 = vpop.f32.mrb[0].mxu0
    %v368 = vadd.f32 %v267, %v367
    %v369 = vpop.f32.mrb[0].mxu0
    %v370 = vpop.f32.mrb[0].mxu0
    %v371 = vadd.f32 %v267, %v370
    %v372 = vpop.f32.mrb[0].mxu0
    %373 = vmatprep.mubr.bf16.mxu0 0
    %374 = vmatmul.mubr.bf16.gmra.mrb[0].mxu0 %v241
    %v375 = vpop.f32.mrb[0].mxu0
    %v376 = vadd.f32 %v267, %v375
    %v377 = vpop.f32.mrb[0].mxu0
    %v378 = vpop.f32.mrb[0].mxu0
    %v379 = vadd.f32 %v267, %v378
    %v380 = vpop.f32.mrb[0].mxu0
    %381 = vmatprep.mubr.bf16.mxu0 0
    %382 = vmatmul.mubr.bf16.gmra.mrb[0].mxu0 %v242
    %v383 = vpop.f32.mrb[0].mxu0
    %v384 = vadd.f32 %v267, %v383
    %v385 = vpop.f32.mrb[0].mxu0
    %v386 = vpop.f32.mrb[0].mxu0
    %v387 = vadd.f32 %v267, %v386
    %v388 = vpop.f32.mrb[0].mxu0
    %389 = vmatprep.mubr.bf16.mxu0 0
    %390 = vmatmul.mubr.bf16.gmra.mrb[0].mxu0 %v243
    %v391 = vpop.f32.mrb[0].mxu0
    %v392 = vadd.f32 %v267, %v391
    %v393 = vpop.f32.mrb[0].mxu0
    %v394 = vpop.f32.mrb[0].mxu0
    %v395 = vadd.f32 %v267, %v394
    %v396 = vpop.f32.mrb[0].mxu0
    %397 = vmatprep.mubr.bf16.mxu0 0
    %398 = vmatmul.mubr.bf16.gmra.mrb[0].mxu0 %v244
    %v399 = vpop.f32.mrb[0].mxu0
    %v400 = vadd.f32 %v267, %v399
    %v401 = vpop.f32.mrb[0].mxu0
    %v402 = vpop.f32.mrb[0].mxu0
    %v403 = vadd.f32 %v267, %v402
    %v404 = vpop.f32.mrb[0].mxu0
    %405 = vmatprep.mubr.bf16.mxu0 0
    %406 = vmatmul.mubr.bf16.gmra.mrb[0].mxu0 %v245
    %v407 = vpop.f32.mrb[0].mxu0
    %v408 = vadd.f32 %v267, %v407
    %v409 = vpop.f32.mrb[0].mxu0
    %v410 = vpop.f32.mrb[0].mxu0
    %v411 = vadd.f32 %v267, %v410
    %v412 = vpop.f32.mrb[0].mxu0
    %413 = vdwg.mxu0
    %v414 = vmax.f32 %v352, 0.0
    %v415 = vmax.f32 %v355, 0.0
    %v416 = vmax.f32 %v360, 0.0
    %v417 = vmax.f32 %v363, 0.0
    %v418 = vmax.f32 %v368, 0.0
    %v419 = vmax.f32 %v371, 0.0
    %v420 = vmax.f32 %v376, 0.0
    %v421 = vmax.f32 %v379, 0.0
    %v422 = vmax.f32 %v384, 0.0
    %v423 = vmax.f32 %v387, 0.0
    %v424 = vmax.f32 %v392, 0.0
    %v425 = vmax.f32 %v395, 0.0
    %v426 = vmax.f32 %v400, 0.0
    %v427 = vmax.f32 %v403, 0.0
    %v428 = vmax.f32 %v408, 0.0
    %v429 = vmax.f32 %v411, 0.0
    %v430 = vld [vmem:[%s5] sm:$0x1]
    %v432 = vlaneseq
    %v433 = vshrl.u32 %v432, 7
    %v434 = vsub.s32 0, %v433
    %v435 = vrot.slane %v430, %v434
    %v437 = vmul.f32 %v414, %v435
    %v438 = vmul.f32 %v415, %v435
    %v439 = vmul.f32 %v416, %v435
    %v440 = vmul.f32 %v417, %v435
    %v441 = vmul.f32 %v418, %v435
    %v442 = vmul.f32 %v419, %v435
    %v443 = vmul.f32 %v420, %v435
    %v444 = vmul.f32 %v421, %v435
    %v445 = vmul.f32 %v422, %v435
    %v446 = vmul.f32 %v423, %v435
    %v447 = vmul.f32 %v424, %v435
    %v448 = vmul.f32 %v425, %v435
    %v449 = vmul.f32 %v426, %v435
    %v450 = vmul.f32 %v427, %v435
    %v451 = vmul.f32 %v428, %v435
    %v452 = vmul.f32 %v429, %v435
    %vm453 = vcmask 523264
    %v454 = vsel %vm453, %v437, 0.0
    %455 = vadd.xlane.f32.xlu0 %v454
    %v456 = vpop.xlane.xlu0 %455
    %v457 = vsel %vm453, %v438, 0.0
    %458 = vadd.xlane.f32.xlu0 %v457
    %v459 = vpop.xlane.xlu0 %458
    %v460 = vsel %vm453, %v439, 0.0
    %461 = vadd.xlane.f32.xlu0 %v460
    %v462 = vpop.xlane.xlu0 %461
    %v463 = vsel %vm453, %v440, 0.0
    %464 = vadd.xlane.f32.xlu0 %v463
    %v465 = vpop.xlane.xlu0 %464
    %v466 = vsel %vm453, %v441, 0.0
    %467 = vadd.xlane.f32.xlu0 %v466
    %v468 = vpop.xlane.xlu0 %467
    %v469 = vsel %vm453, %v442, 0.0
    %470 = vadd.xlane.f32.xlu0 %v469
    %v471 = vpop.xlane.xlu0 %470
    %v472 = vsel %vm453, %v443, 0.0
    %473 = vadd.xlane.f32.xlu0 %v472
    %v474 = vpop.xlane.xlu0 %473
    %v475 = vsel %vm453, %v444, 0.0
    %476 = vadd.xlane.f32.xlu0 %v475
    %v477 = vpop.xlane.xlu0 %476
    %v478 = vsel %vm453, %v445, 0.0
    %479 = vadd.xlane.f32.xlu0 %v478
    %v480 = vpop.xlane.xlu0 %479
    %v481 = vsel %vm453, %v446, 0.0
    %482 = vadd.xlane.f32.xlu0 %v481
    %v483 = vpop.xlane.xlu0 %482
    %v484 = vsel %vm453, %v447, 0.0
    %485 = vadd.xlane.f32.xlu0 %v484
    %v486 = vpop.xlane.xlu0 %485
    %v487 = vsel %vm453, %v448, 0.0
    %488 = vadd.xlane.f32.xlu0 %v487
    %v489 = vpop.xlane.xlu0 %488
    %v490 = vsel %vm453, %v449, 0.0
    %491 = vadd.xlane.f32.xlu0 %v490
    %v492 = vpop.xlane.xlu0 %491
    %v493 = vsel %vm453, %v450, 0.0
    %494 = vadd.xlane.f32.xlu0 %v493
    %v495 = vpop.xlane.xlu0 %494
    %v496 = vsel %vm453, %v451, 0.0
    %497 = vadd.xlane.f32.xlu0 %v496
    %v498 = vpop.xlane.xlu0 %497
    %v499 = vsel %vm453, %v452, 0.0
    %500 = vadd.xlane.f32.xlu0 %v499
    %v501 = vpop.xlane.xlu0 %500
    %s502 = sld [smem:[#allocation2]]
    %v503 = vstv %s502
    %v504 = vadd.f32 %v456, %v503
    %v505 = vadd.f32 %v459, %v503
    %v506 = vadd.f32 %v462, %v503
    %v507 = vadd.f32 %v465, %v503
    %v508 = vadd.f32 %v468, %v503
    %v509 = vadd.f32 %v471, %v503
    %v510 = vadd.f32 %v474, %v503
    %v511 = vadd.f32 %v477, %v503
    %v512 = vadd.f32 %v480, %v503
    %v513 = vadd.f32 %v483, %v503
    %v514 = vadd.f32 %v486, %v503
    %v515 = vadd.f32 %v489, %v503
    %v516 = vadd.f32 %v492, %v503
    %v517 = vadd.f32 %v495, %v503
    %v518 = vadd.f32 %v498, %v503
    %v519 = vadd.f32 %v501, %v503
    %v536 = vlaneseq
    %v537 = vand.u32 %v536, 127
    %v538 = vlaneseq
    %v539 = vshrl.u32 %v538, 7
    %v540 = vsub.s32 %v537, %v539
    %v541 = vrot.slane %v504, %v540
    %v542 = vadd.s32 %v537, 4294967288
    %v543 = vlaneseq
    %v544 = vshrl.u32 %v543, 7
    %v545 = vsub.s32 %v542, %v544
    %v546 = vrot.slane %v505, %v545
    %vm547 = vcmask 130112
    %v548 = vsel %vm547, %v546, %v541
    %v549 = vadd.s32 %v537, 4294967280
    %v550 = vlaneseq
    %v551 = vshrl.u32 %v550, 7
    %v552 = vsub.s32 %v549, %v551
    %v553 = vrot.slane %v506, %v552
    %vm554 = vcmask 195712
    %v555 = vsel %vm554, %v553, %v548
    %v556 = vadd.s32 %v537, 4294967272
    %v557 = vlaneseq
    %v558 = vshrl.u32 %v557, 7
    %v559 = vsub.s32 %v556, %v558
    %v560 = vrot.slane %v507, %v559
    %vm561 = vcmask 261312
    %v562 = vsel %vm561, %v560, %v555
    %v563 = vadd.s32 %v537, 4294967264
    %v564 = vlaneseq
    %v565 = vshrl.u32 %v564, 7
    %v566 = vsub.s32 %v563, %v565
    %v567 = vrot.slane %v508, %v566
    %vm568 = vcmask 326912
    %v569 = vsel %vm568, %v567, %v562
    %v570 = vadd.s32 %v537, 4294967256
    %v571 = vlaneseq
    %v572 = vshrl.u32 %v571, 7
    %v573 = vsub.s32 %v570, %v572
    %v574 = vrot.slane %v509, %v573
    %vm575 = vcmask 392512
    %v576 = vsel %vm575, %v574, %v569
    %v577 = vadd.s32 %v537, 4294967248
    %v578 = vlaneseq
    %v579 = vshrl.u32 %v578, 7
    %v580 = vsub.s32 %v577, %v579
    %v581 = vrot.slane %v510, %v580
    %vm582 = vcmask 458112
    %v583 = vsel %vm582, %v581, %v576
    %v584 = vadd.s32 %v537, 4294967240
    %v585 = vlaneseq
    %v586 = vshrl.u32 %v585, 7
    %v587 = vsub.s32 %v584, %v586
    %v588 = vrot.slane %v511, %v587
    %vm589 = vcmask 523712
    %v590 = vsel %vm589, %v588, %v583
    %v591 = vadd.s32 %v537, 4294967232
    %v592 = vlaneseq
    %v593 = vshrl.u32 %v592, 7
    %v594 = vsub.s32 %v591, %v593
    %v595 = vrot.slane %v512, %v594
    %vm596 = vcmask 589312
    %v597 = vsel %vm596, %v595, %v590
    %v598 = vadd.s32 %v537, 4294967224
    %v599 = vlaneseq
    %v600 = vshrl.u32 %v599, 7
    %v601 = vsub.s32 %v598, %v600
    %v602 = vrot.slane %v513, %v601
    %vm603 = vcmask 654912
    %v604 = vsel %vm603, %v602, %v597
    %v605 = vadd.s32 %v537, 4294967216
    %v606 = vlaneseq
    %v607 = vshrl.u32 %v606, 7
    %v608 = vsub.s32 %v605, %v607
    %v609 = vrot.slane %v514, %v608
    %vm610 = vcmask 720512
    %v611 = vsel %vm610, %v609, %v604
    %v612 = vadd.s32 %v537, 4294967208
    %v613 = vlaneseq
    %v614 = vshrl.u32 %v613, 7
    %v615 = vsub.s32 %v612, %v614
    %v616 = vrot.slane %v515, %v615
    %vm617 = vcmask 786112
    %v618 = vsel %vm617, %v616, %v611
    %v619 = vadd.s32 %v537, 4294967200
    %v620 = vlaneseq
    %v621 = vshrl.u32 %v620, 7
    %v622 = vsub.s32 %v619, %v621
    %v623 = vrot.slane %v516, %v622
    %vm624 = vcmask 851712
    %v625 = vsel %vm624, %v623, %v618
    %v626 = vadd.s32 %v537, 4294967192
    %v627 = vlaneseq
    %v628 = vshrl.u32 %v627, 7
    %v629 = vsub.s32 %v626, %v628
    %v630 = vrot.slane %v517, %v629
    %vm631 = vcmask 917312
    %v632 = vsel %vm631, %v630, %v625
    %v633 = vadd.s32 %v537, 4294967184
    %v634 = vlaneseq
    %v635 = vshrl.u32 %v634, 7
    %v636 = vsub.s32 %v633, %v635
    %v637 = vrot.slane %v518, %v636
    %vm638 = vcmask 982912
    %v639 = vsel %vm638, %v637, %v632
    %v640 = vadd.s32 %v537, 4294967176
    %v641 = vlaneseq
    %v642 = vshrl.u32 %v641, 7
    %v643 = vsub.s32 %v640, %v642
    %v644 = vrot.slane %v519, %v643
    %vm645 = vcmask 1048512
    %v646 = vsel %vm645, %v644, %v639
    %648 = vst [vmem:[#allocation3] sm:$0x1] %v646
    // Predicated region
    $region30: #{tpu_custom_call.1} parent=1 // pred_check
      _
    $region31: #{tpu_custom_call.1} parent=1 // pred_check_branch
      %650 = sbr.rel (0) target = $region33
    $region32: #{tpu_custom_call.1} parent=1 // pred_region
      %s652 = ssub.s32 16, 16
      %653 = vsyncadd [#allocation4], %s652
      %s655 = sshll.u32 [#allocation3], 4
      %s656 = int_to_ptr.vmem [resolvable:$true] %s655
      %658 = dma.vmem_to_hbm [thread:$0]  %s656, 16, %s7, [#allocation4]
    $region33: #{tpu_custom_call.1} parent=1 // pred_fallthru
      _
    // Predicated region
    $region34: #{tpu_custom_call.1} parent=1 // pred_check
      _
    $region35: #{tpu_custom_call.1} parent=1 // pred_check_branch
      %660 = sbr.rel (0) target = $region37
    $region36: #{tpu_custom_call.1} parent=1 // pred_region
      %661 = dma.done [#allocation4], 16
    $region37: #{tpu_custom_call.1} parent=1 // pred_fallthru
      _
    %662 = vsyncpa [#allocation4], 1

</llo_original>
